<compile_context>
chip_gen: v7x
topology: tpu7x:2x2x1
jax: 0.10.0
libtpu: 0.0.40
codegen_flags: <defaults>
</compile_context>

<pallas_src>
import jax
import jax.numpy as jnp
from jax.experimental import pallas as pl
from jax.experimental.pallas import tpu as pltpu


def _round_up(x: int, m: int) -> int:
    return ((x + m - 1) // m) * m


def _round_down(x: int, m: int) -> int:
    return (x // m) * m


def _linreg_kernel(w_ref, b_ref, x_ref, o_ref):
    # w_ref, b_ref: (1,) f32 scalars in SMEM.  x_ref / o_ref: (tm, C) lane-dense VMEM tiles.
    w = w_ref[0]
    b = b_ref[0]
    xf = x_ref[...].astype(jnp.float32)            # f32 accumulate even for bf16 inputs
    o_ref[...] = (xf * w + b).astype(o_ref.dtype)


def _head_pallas(x2d, w_scalar, b_scalar, tm, c, dtype):
    rows = x2d.shape[0]
    itemsize = jnp.dtype(dtype).itemsize
    n_elems = rows * c
    grid = (pl.cdiv(rows, tm),)                    # partial last block handled by Pallas
    return pl.pallas_call(
        _linreg_kernel,
        out_shape=jax.ShapeDtypeStruct((rows, c), dtype),
        grid=grid,
        in_specs=[
            pl.BlockSpec(memory_space=pltpu.MemorySpace.SMEM),   # weight scalar (1,)
            pl.BlockSpec(memory_space=pltpu.MemorySpace.SMEM),   # bias scalar (1,)
            pl.BlockSpec((tm, c), lambda i: (i, 0)),             # x tile (double-buffered)
        ],
        out_specs=pl.BlockSpec((tm, c), lambda i: (i, 0)),       # y tile (double-buffered)
        compiler_params=pltpu.CompilerParams(
            dimension_semantics=("parallel",),                   # shard grid across TCs on v7x
            vmem_limit_bytes=48 << 20,                           # room for 4 x 4 MiB buffers
        ),
        cost_estimate=pl.CostEstimate(
            flops=2 * n_elems,
            transcendentals=0,
            bytes_accessed=2 * n_elems * itemsize,
        ),
    )(w_scalar, b_scalar, x2d)


def linear_regression_forward(x, weight, bias, *, lane_width=1024, tile_rows=1024):
    """x: (..., 1), weight: (1, 1), bias: (1,) -> same shape/dtype as x."""
    assert x.shape[-1] == 1, "nn.Linear(1, 1) expects a trailing feature dim of 1"
    assert lane_width % 128 == 0

    orig_shape = x.shape
    dtype = x.dtype
    itemsize = jnp.dtype(dtype).itemsize
    sublane = max(8, 32 // itemsize)               # 8 (f32) / 16 (bf16) / 32 (int8, fp8)
    c = int(lane_width)
    chunk = sublane * c                            # minimal aligned unit for the 2-D view

    n = int(x.size)
    w_scalar = weight.reshape((1,)).astype(jnp.float32)
    b_scalar = bias.reshape((1,)).astype(jnp.float32)

    n_head = _round_down(n, chunk)
    n_tail = n - n_head

    x_flat = x.reshape((-1,))
    y_head = None

    if n_head > 0:
        rows_head = n_head // c                    # multiple of `sublane`
        # Tile-row selection: honor the caller but enforce a ~1 MiB-per-tile floor
        # (avoids thousands of 0.35 us grid steps) and clamp to the data extent.
        floor_rows = _round_up(max(1, (1 << 20) // (c * itemsize)), sublane)
        tm = _round_up(max(int(tile_rows), 1), sublane)
        tm = max(tm, min(floor_rows, rows_head))
        tm = min(tm, rows_head)

        if n_tail == 0:
            x2d = x_flat.reshape((rows_head, c))   # aligned fast path: pure bitcast, zero copy
        else:
            # Unaligned path only: prefix slice of the head (one copy of the head,
            # still much cheaper than the old full-array pad + output trim).
            x2d = x_flat[:n_head].reshape((rows_head, c))

        y_head = _head_pallas(x2d, w_scalar, b_scalar, tm, c, dtype).reshape((-1,))

    if n_tail > 0:
        # Tiny (< sublane * lane_width element) tail: plain XLA FMA, negligible cost.
        x_tail = x_flat[n_head:]
        y_tail = (x_tail.astype(jnp.float32) * w_scalar[0] + b_scalar[0]).astype(dtype)
        y_flat = y_tail if y_head is None else jnp.concatenate([y_head, y_tail])
    else:
        y_flat = y_head

    return y_flat.reshape(orig_shape)


if __name__ == "__main__":
    key = jax.random.PRNGKey(0)
    kw, kb, k1, k2, k3 = jax.random.split(key, 5)

    # Deterministic parameters matching nn.Linear(1, 1) shapes.
    weight = jax.random.uniform(kw, (1, 1), jnp.float32, minval=-1.0, maxval=1.0)
    bias = jax.random.uniform(kb, (1,), jnp.float32, minval=-1.0, maxval=1.0)

    # 1) Tile-aligned N (8 * 1024): zero-copy fast path, single kernel block.
    x1 = jax.random.normal(k1, (8192, 1), jnp.float32)
    y1 = jax.block_until_ready(linear_regression_forward(x1, weight, bias))
    assert y1.shape == (8192, 1)
    assert jnp.allclose(y1, x1 @ weight.T + bias, atol=1e-6), "mismatch (aligned path)"

    # 2) Unaligned N: aligned head through the kernel + small XLA tail + concat.
    x2 = jax.random.normal(k2, (20000, 1), jnp.float32)
    y2 = jax.block_until_ready(linear_regression_forward(x2, weight, bias))
    assert y2.shape == (20000, 1)
    assert jnp.allclose(y2, x2 @ weight.T + bias, atol=1e-6), "mismatch (unaligned path)"

    # 3) Multi-step grid with a partial last block (rows_head=520, tm=256 -> 3 steps) + tail.
    x3 = jax.random.normal(k3, (532580, 1), jnp.float32)
    y3 = jax.block_until_ready(linear_regression_forward(x3, weight, bias, tile_rows=256))
    assert y3.shape == (532580, 1)
    assert jnp.allclose(y3, x3 @ weight.T + bias, atol=1e-6), "mismatch (multi-step path)"

    print("KERNEL_OK")
</pallas_src>

<mosaic_0001>
module attributes {stable_mosaic.version = 11 : i64} {
  func.func @_linreg_kernel(%arg0: i32, %arg1: memref<1xf32, #tpu.memory_space<smem>>, %arg2: memref<1xf32, #tpu.memory_space<smem>>, %arg3: memref<8x1024xf32, #tpu.memory_space<vmem>>, %arg4: memref<8x1024xf32, #tpu.memory_space<vmem>>) attributes {dimension_semantics = [#tpu.dimension_semantics<parallel>], iteration_bounds = array<i64: 1>, scalar_prefetch = 0 : i64, scratch_operands = 0 : i64, tpu.core_type = #tpu.core_type<tc>, window_params = [{transform_indices = @transform_0, window_bounds = array<i64: 1>}, {transform_indices = @transform_1, window_bounds = array<i64: 1>}, {transform_indices = @transform_2, window_bounds = array<i64: 8, 1024>}, {transform_indices = @transform_3, window_bounds = array<i64: 8, 1024>}]} {
    %c0 = arith.constant 0 : index
    %0 = memref.load %arg1[%c0] : memref<1xf32, #tpu.memory_space<smem>>
    %c0_0 = arith.constant 0 : index
    %1 = memref.load %arg2[%c0_0] : memref<1xf32, #tpu.memory_space<smem>>
    %c0_1 = arith.constant 0 : index
    %c0_2 = arith.constant 0 : index
    %2 = vector.load %arg3[%c0_1, %c0_2] : memref<8x1024xf32, #tpu.memory_space<vmem>>, vector<8x1024xf32>
    %3 = vector.broadcast %0 : f32 to vector<8x1024xf32>
    %4 = arith.mulf %2, %3 : vector<8x1024xf32>
    %5 = vector.broadcast %1 : f32 to vector<8x1024xf32>
    %6 = arith.addf %4, %5 : vector<8x1024xf32>
    %c0_3 = arith.constant 0 : index
    %c0_4 = arith.constant 0 : index
    %7 = vector.load %arg4[%c0_3, %c0_4] : memref<8x1024xf32, #tpu.memory_space<vmem>>, vector<8x1024xf32>
    tpu.vector_store %arg4[%c0_3, %c0_4], %6 {strides = array<i32>} : memref<8x1024xf32, #tpu.memory_space<vmem>>, vector<8x1024xf32>,
    return
  }
  func.func @transform_0(%arg0: i32) -> i32 {
    %c0_i32 = arith.constant 0 : i32
    %c0_i32_0 = arith.constant 0 : i32
    return %c0_i32 : i32
  }
  func.func @transform_1(%arg0: i32) -> i32 {
    %c0_i32 = arith.constant 0 : i32
    %c0_i32_0 = arith.constant 0 : i32
    return %c0_i32 : i32
  }
  func.func @transform_2(%arg0: i32) -> (i32, i32) {
    %c0_i32 = arith.constant 0 : i32
    %c0_i32_0 = arith.constant 0 : i32
    return %arg0, %c0_i32 : i32, i32
  }
  func.func @transform_3(%arg0: i32) -> (i32, i32) {
    %c0_i32 = arith.constant 0 : i32
    %c0_i32_0 = arith.constant 0 : i32
    return %arg0, %c0_i32 : i32, i32
  }
}

</mosaic_0001>

<llo_original>
// kernel: tpu_custom_call.1
$region0: #{tpu_custom_call.1}
  #allocation0 [shape = 'u32[]', space=smem, size = 0x4, offset = 0x4, fixed_abs, tag = 'smem constant byte address 0x4 - core index']
  #allocation1 [shape = 'u32[144,128]{1,0:T(1,128)}', space=vmem, size = 0x12000, scoped, tag = 'internal scratch']
  #allocation2 [shape = 'f32[1]{0:T(128)S(6)}', space=smem, size = 0x200, scoped, tag = 'scoped memory for tpu_custom_call.1']
  #allocation3 [shape = 'f32[1]{0:T(128)S(6)}', space=smem, size = 0x200, scoped, tag = 'scoped memory for tpu_custom_call.1']
  %s0 = inlined_call_operand.<no memory space> [shape: f32[1], index: 0, kind: input, shape index: {}]
  %s1 = inlined_call_operand.<no memory space> [shape: f32[1], index: 1, kind: input, shape index: {}]
  %s2 = inlined_call_operand.hbm [shape: f32[8,1024], index: 2, kind: input, shape index: {}]
  %s3 = inlined_call_operand.hbm [shape: f32[8,1024], index: 3, kind: output, shape index: {}]
  %s4 = sld [smem:[#allocation0]]
  $region26: #{tpu_custom_call.1} parent=0
    _
  %s6 = ssub.s32 1, %s4
  %s7 = scalar_select 0, %s6, %s4
  %8 = sst [smem:[#allocation2]] %s0
  %9 = sst [smem:[#allocation3]] %s1
  $region1: #{tpu_custom_call.1} parent=0
    #allocation4 [shape = 'u8[32768]{0}', space=vmem, size = 0x8000, scoped, tag = 'input window, operand 2, single buffered']
    #allocation5 [shape = 's32[1]{0}', space=sflag, size = 0x4, scoped, tag = 'scoped memory for tpu_custom_call.1']
    #allocation6 [shape = 's32[1]{0}', space=sflag, size = 0x4, scoped, tag = 'scoped memory for tpu_custom_call.1']
    #allocation7 [shape = 'u8[32768]{0}', space=vmem, size = 0x8000, scoped, tag = 'output window, operand 0, single buffered']
    %10 = vsyncpa [#allocation5], 0
    %11 = vsyncpa [#allocation6], 0
    // Predicated region
    $region2: #{tpu_custom_call.1} parent=1 // pred_check
      _
    $region3: #{tpu_custom_call.1} parent=1 // pred_check_branch
      %13 = sbr.rel (0) target = $region5
    $region4: #{tpu_custom_call.1} parent=1 // pred_region
      _
    $region5: #{tpu_custom_call.1} parent=1 // pred_fallthru
      _
    // Predicated region
    $region6: #{tpu_custom_call.1} parent=1 // pred_check
      _
    $region7: #{tpu_custom_call.1} parent=1 // pred_check_branch
      %15 = sbr.rel (0) target = $region9
    $region8: #{tpu_custom_call.1} parent=1 // pred_region
      _
    $region9: #{tpu_custom_call.1} parent=1 // pred_fallthru
      _
    // Predicated region
    $region10: #{tpu_custom_call.1} parent=1 // pred_check
      _
    $region11: #{tpu_custom_call.1} parent=1 // pred_check_branch
      %17 = sbr.rel (0) target = $region13
    $region12: #{tpu_custom_call.1} parent=1 // pred_region
      %s19 = ssub.s32 1024, 1024
      %20 = vsyncadd [#allocation5], %s19
      %s22 = sshll.u32 [#allocation4], 4
      %s23 = int_to_ptr.vmem [resolvable:$true] %s22
      %25 = dma.hbm_to_vmem [thread:$0]  %s2, 1024, %s23, [#allocation5]
    $region13: #{tpu_custom_call.1} parent=1 // pred_fallthru
      _
    // Predicated region
    $region14: #{tpu_custom_call.1} parent=1 // pred_check
      _
    $region15: #{tpu_custom_call.1} parent=1 // pred_check_branch
      %27 = sbr.rel (0) target = $region17
    $region16: #{tpu_custom_call.1} parent=1 // pred_region
      %28 = dma.done [#allocation5], 1024
    $region17: #{tpu_custom_call.1} parent=1 // pred_fallthru
      _
    %s29 = sld [smem:[#allocation2]]
    %s30 = sld [smem:[#allocation3]]
    %v31 = vld [vmem:[#allocation4] sm:$0xff]
    %v32 = vld [vmem:[#allocation4 + $0x8] sm:$0xff]
    %v33 = vld [vmem:[#allocation4 + $0x10] sm:$0xff]
    %v34 = vld [vmem:[#allocation4 + $0x18] sm:$0xff]
    %v35 = vld [vmem:[#allocation4 + $0x20] sm:$0xff]
    %v36 = vld [vmem:[#allocation4 + $0x28] sm:$0xff]
    %v37 = vld [vmem:[#allocation4 + $0x30] sm:$0xff]
    %v38 = vld [vmem:[#allocation4 + $0x38] sm:$0xff]
    %v39 = vstv %s29
    %v40 = vmul.f32 %v31, %v39
    %v41 = vmul.f32 %v32, %v39
    %v42 = vmul.f32 %v33, %v39
    %v43 = vmul.f32 %v34, %v39
    %v44 = vmul.f32 %v35, %v39
    %v45 = vmul.f32 %v36, %v39
    %v46 = vmul.f32 %v37, %v39
    %v47 = vmul.f32 %v38, %v39
    %v48 = vstv %s30
    %v49 = vadd.f32 %v40, %v48
    %v50 = vadd.f32 %v41, %v48
    %v51 = vadd.f32 %v42, %v48
    %v52 = vadd.f32 %v43, %v48
    %v53 = vadd.f32 %v44, %v48
    %v54 = vadd.f32 %v45, %v48
    %v55 = vadd.f32 %v46, %v48
    %v56 = vadd.f32 %v47, %v48
    %57 = vst [vmem:[#allocation7] sm:$0xff] %v49
    %58 = vst [vmem:[#allocation7 + $0x8] sm:$0xff] %v50
    %59 = vst [vmem:[#allocation7 + $0x10] sm:$0xff] %v51
    %60 = vst [vmem:[#allocation7 + $0x18] sm:$0xff] %v52
    %61 = vst [vmem:[#allocation7 + $0x20] sm:$0xff] %v53
    %62 = vst [vmem:[#allocation7 + $0x28] sm:$0xff] %v54
    %63 = vst [vmem:[#allocation7 + $0x30] sm:$0xff] %v55
    %64 = vst [vmem:[#allocation7 + $0x38] sm:$0xff] %v56
    // Predicated region
    $region18: #{tpu_custom_call.1} parent=1 // pred_check
      _
    $region19: #{tpu_custom_call.1} parent=1 // pred_check_branch
      %66 = sbr.rel (0) target = $region21
    $region20: #{tpu_custom_call.1} parent=1 // pred_region
      %s68 = ssub.s32 1024, 1024
      %69 = vsyncadd [#allocation6], %s68
      %s71 = sshll.u32 [#allocation7], 4
      %s72 = int_to_ptr.vmem [resolvable:$true] %s71
      %74 = dma.vmem_to_hbm [thread:$0]  %s72, 1024, %s3, [#allocation6]
    $region21: #{tpu_custom_call.1} parent=1 // pred_fallthru
      _
    // Predicated region
    $region22: #{tpu_custom_call.1} parent=1 // pred_check
      _
    $region23: #{tpu_custom_call.1} parent=1 // pred_check_branch
      %76 = sbr.rel (0) target = $region25
    $region24: #{tpu_custom_call.1} parent=1 // pred_region
      %77 = dma.done [#allocation6], 1024
    $region25: #{tpu_custom_call.1} parent=1 // pred_fallthru
      _
    %78 = vsyncpa [#allocation5], 1
    %79 = vsyncpa [#allocation6], 1

</llo_original>
